<compile_context>
chip_gen: v7x
topology: tpu7x:2x2x1
jax: 0.10.0
libtpu: 0.0.40
codegen_flags: <defaults>
</compile_context>

<pallas_src>
import functools
import math

import jax
import jax.numpy as jnp
from jax.experimental import pallas as pl
from jax.experimental.pallas import tpu as pltpu

_MIB = 1024 * 1024


def _tpu_vmem_capacity_bytes() -> int:
    """Physical VMEM per TensorCore; conservative fallback = v7x (64 MiB)."""
    try:
        return int(pltpu.get_tpu_info().vmem_capacity_bytes)
    except Exception:
        return 64 * _MIB


def _ln_math(x, params, eps):
    """LayerNorm over the last axis of a (tile_rows, emb) tile.

    params: (2, emb) = [scale; shift] already in the compute dtype.
    Reductions accumulate in f32; elementwise normalize/affine stays in the
    input dtype (bf16 VPU is native on v6e/v7x; neutral on v5e).
    """
    emb = x.shape[-1]
    inv_n = jnp.float32(1.0 / emb)
    mean32 = jnp.sum(x.astype(jnp.float32), axis=-1, keepdims=True) * inv_n
    if x.dtype == jnp.float32:
        centered = x - mean32
        var = jnp.sum(centered * centered, axis=-1, keepdims=True) * inv_n  # unbiased=False
        norm = centered * jax.lax.rsqrt(var + eps)
    else:
        centered = x - mean32.astype(x.dtype)
        c32 = centered.astype(jnp.float32)
        var = jnp.sum(c32 * c32, axis=-1, keepdims=True) * inv_n
        norm = centered * jax.lax.rsqrt(var + eps).astype(x.dtype)
    return norm * params[0:1, :] + params[1:2, :]


def _layernorm_kernel(x_ref, p_ref, o_ref, *, eps):
    o_ref[...] = _ln_math(x_ref[...], p_ref[...], eps).astype(o_ref.dtype)


def _add_layernorm_kernel(x_ref, r_ref, p_ref, y_ref, o_ref, *, eps):
    # Fused residual add: write y = x + shortcut (next block's shortcut) and
    # LN(y) in one pass, saving one full activation HBM round-trip.
    y = x_ref[...] + r_ref[...]
    y_ref[...] = y
    o_ref[...] = _ln_math(y, p_ref[...], eps).astype(o_ref.dtype)


def _choose_tile_rows(rows, emb, itemsize, n_streams, tile_rows):
    # Sublane packing granularity: 8 rows (f32), 16 (bf16), 32 (int8/fp8).
    gran = max(8, 32 // itemsize)
    auto = tile_rows is None
    if auto:
        vmem_cap = _tpu_vmem_capacity_bytes()
        # Cap buffer usage so the same tiles also fit v7x's 64 MiB VMEM.
        vmem_budget = min(vmem_cap * 3 // 8, 28 * _MIB)
        # n_streams row-tiled arrays, each double-buffered, + ~2 f32 temps.
        per_row = emb * (2 * itemsize * n_streams + 2 * 4)
        # Byte-based cap: target >= ~4 MiB input blocks (was a fixed 1024 rows).
        row_cap = max(1024, (4 * _MIB) // (emb * itemsize))
        tile_rows = min(max(vmem_budget // per_row, gran), row_cap)
    tile_rows = max((int(tile_rows) // gran) * gran, gran)
    if auto and rows > 2 * gran:
        # Keep >= 2 grid blocks (>= 4 when blocks stay >= ~2 MiB) so the
        # "parallel" grid axis shards across both v7x TensorCores.
        split_cap = max(((rows // 2) // gran) * gran, gran)
        quarter = ((rows // 4) // gran) * gran
        if quarter >= gran and quarter * emb * itemsize >= 2 * _MIB:
            split_cap = quarter
        tile_rows = min(tile_rows, split_cap)
    if tile_rows >= rows:
        tile_rows = rows  # single full-extent row block (always legal)
    return tile_rows


def _ln_call(x2, res2, params, eps, tile_rows):
    rows, emb = x2.shape
    itemsize = x2.dtype.itemsize
    n_streams = 2 if res2 is None else 4
    tile_rows = _choose_tile_rows(rows, emb, itemsize, n_streams, tile_rows)

    # Rows are independent: grid = cdiv(rows, tile_rows); the partial last
    # block's OOB reads are unspecified and its OOB writes discarded, so no
    # host-side row pad / slice is needed.  Last block dim = full emb extent,
    # so emb % 128 != 0 (e.g. 1600) needs no lane pad either.
    grid = (pl.cdiv(rows, tile_rows),)
    row_spec = pl.BlockSpec((tile_rows, emb), lambda i: (i, 0))
    p_spec = pl.BlockSpec((2, emb), lambda i: (0, 0))  # grid-invariant params

    vmem_cap = _tpu_vmem_capacity_bytes()
    cparams = pltpu.CompilerParams(
        dimension_semantics=("parallel",),                 # megacore sharding on v7x
        vmem_limit_bytes=min(vmem_cap // 2, 64 * _MIB),    # raises v5e's 16 MiB default
    )

    if res2 is None:
        return pl.pallas_call(
            functools.partial(_layernorm_kernel, eps=eps),
            out_shape=jax.ShapeDtypeStruct((rows, emb), x2.dtype),
            grid_spec=pltpu.PrefetchScalarGridSpec(
                num_scalar_prefetch=0,
                grid=grid,
                in_specs=[row_spec, p_spec],
                out_specs=row_spec,
            ),
            compiler_params=cparams,
        )(x2, params)

    return pl.pallas_call(
        functools.partial(_add_layernorm_kernel, eps=eps),
        out_shape=(jax.ShapeDtypeStruct((rows, emb), x2.dtype),
                   jax.ShapeDtypeStruct((rows, emb), x2.dtype)),
        grid_spec=pltpu.PrefetchScalarGridSpec(
            num_scalar_prefetch=0,
            grid=grid,
            in_specs=[row_spec, row_spec, p_spec],
            out_specs=[row_spec, row_spec],
        ),
        compiler_params=cparams,
    )(x2, res2, params)


def _pack_params(scale, shift, x_dtype):
    param_dtype = jnp.float32 if x_dtype == jnp.float32 else x_dtype
    return jnp.stack([scale.reshape(-1), shift.reshape(-1)]).astype(param_dtype)


def layer_norm(x, scale, shift, *, eps=1e-5, tile_rows=None):
    """LayerNorm over the last axis; matches the PyTorch module (eps=1e-5,
    biased variance)."""
    orig_shape = x.shape
    emb = orig_shape[-1]
    rows = math.prod(orig_shape[:-1]) if len(orig_shape) > 1 else 1
    params = _pack_params(scale, shift, x.dtype)
    out2 = _ln_call(x.reshape(rows, emb), None, params, eps, tile_rows)
    return out2.reshape(orig_shape)


def add_layer_norm(x, shortcut, scale, shift, *, eps=1e-5, tile_rows=None):
    """Fused `y = x + shortcut; LN(y)` (TransformerBlock pattern).
    Returns (y, LN(y)); y is the next shortcut.  Saves one HBM activation pass
    versus separate add-then-norm."""
    orig_shape = x.shape
    emb = orig_shape[-1]
    rows = math.prod(orig_shape[:-1]) if len(orig_shape) > 1 else 1
    params = _pack_params(scale, shift, x.dtype)
    y2, out2 = _ln_call(x.reshape(rows, emb), shortcut.reshape(rows, emb),
                        params, eps, tile_rows)
    return y2.reshape(orig_shape), out2.reshape(orig_shape)


def _reference(x, scale, shift, eps=1e-5):
    x32 = x.astype(jnp.float32)
    mean = jnp.mean(x32, axis=-1, keepdims=True)
    var = jnp.mean((x32 - mean) ** 2, axis=-1, keepdims=True)
    out = scale.astype(jnp.float32) * ((x32 - mean) * jax.lax.rsqrt(var + eps)) \
        + shift.astype(jnp.float32)
    return out.astype(x.dtype)


if __name__ == "__main__":
    key = jax.random.PRNGKey(0)
    k1, k2, k3, k4, k5 = jax.random.split(key, 5)

    # 1) toy GPT shape: batch=2, seq=8, emb_dim=32 (emb not a multiple of 128
    #    -> full-extent lane block, no pad / no slice)
    x1 = jax.random.normal(k1, (2, 8, 32), dtype=jnp.float32)
    s1 = jnp.ones((32,), jnp.float32)     # nn.Parameter(torch.ones(emb_dim))
    b1 = jnp.zeros((32,), jnp.float32)    # nn.Parameter(torch.zeros(emb_dim))
    out1 = jax.block_until_ready(layer_norm(x1, s1, b1))
    assert jnp.allclose(out1, _reference(x1, s1, b1), atol=1e-5, rtol=1e-5), \
        "mismatch (f32, emb=32)"

    # 2) emb=128, rows=40 with explicit tile_rows=16 -> partial last block path
    x2 = jax.random.normal(k2, (2, 20, 128), dtype=jnp.float32)
    s2 = 1.0 + 0.1 * jax.random.normal(k3, (128,), dtype=jnp.float32)
    b2 = 0.05 * jnp.arange(128, dtype=jnp.float32)
    out2 = jax.block_until_ready(layer_norm(x2, s2, b2, tile_rows=16))
    assert jnp.allclose(out2, _reference(x2, s2, b2), atol=1e-5, rtol=1e-5), \
        "mismatch (f32, partial row tile)"

    # 3) bf16 activations (bf16 elementwise path, f32-accumulated reductions)
    x3 = jax.random.normal(k3, (2, 8, 128), dtype=jnp.float32).astype(jnp.bfloat16)
    s3 = jnp.ones((128,), jnp.float32)
    b3 = jnp.zeros((128,), jnp.float32)
    out3 = jax.block_until_ready(layer_norm(x3, s3, b3))
    assert jnp.allclose(out3.astype(jnp.float32),
                        _reference(x3, s3, b3).astype(jnp.float32),
                        atol=5e-2, rtol=5e-2), "mismatch (bf16)"

    # 4) auto tiling with non-128 emb and rows large enough to split into >=2
    #    grid blocks (v7x dual-TC path)
    x4 = jax.random.normal(k4, (4, 32, 160), dtype=jnp.float32)
    s4 = 1.0 + 0.1 * jax.random.normal(k5, (160,), dtype=jnp.float32)
    b4 = 0.02 * jnp.arange(160, dtype=jnp.float32)
    out4 = jax.block_until_ready(layer_norm(x4, s4, b4))
    assert jnp.allclose(out4, _reference(x4, s4, b4), atol=1e-5, rtol=1e-5), \
        "mismatch (f32, emb=160 auto tiles)"

    # 5) fused residual add + LayerNorm (x = x + shortcut; x = norm(x))
    xr = jax.random.normal(k1, (2, 8, 64), dtype=jnp.float32)
    rr = jax.random.normal(k2, (2, 8, 64), dtype=jnp.float32)
    sr = 1.0 + 0.05 * jax.random.normal(k4, (64,), dtype=jnp.float32)
    br = 0.01 * jnp.arange(64, dtype=jnp.float32)
    y5, ln5 = add_layer_norm(xr, rr, sr, br)
    y5, ln5 = jax.block_until_ready((y5, ln5))
    assert jnp.allclose(y5, xr + rr, atol=1e-6, rtol=1e-6), "mismatch (fused add)"
    assert jnp.allclose(ln5, _reference(xr + rr, sr, br), atol=1e-5, rtol=1e-5), \
        "mismatch (fused add + LN)"

    print("KERNEL_OK")
</pallas_src>

<mosaic_0001>
module attributes {stable_mosaic.version = 11 : i64} {
  func.func @_layernorm_kernel(%arg0: i32, %arg1: memref<16x32xf32, #tpu.memory_space<vmem>>, %arg2: memref<2x32xf32, #tpu.memory_space<vmem>>, %arg3: memref<16x32xf32, #tpu.memory_space<vmem>>) attributes {dimension_semantics = [#tpu.dimension_semantics<parallel>], iteration_bounds = array<i64: 1>, scalar_prefetch = 0 : i64, scratch_operands = 0 : i64, tpu.core_type = #tpu.core_type<tc>, window_params = [{transform_indices = @transform_0, window_bounds = array<i64: 16, 32>}, {pipeline_mode = #tpu.pipeline_mode<synchronous>, transform_indices = @transform_1, window_bounds = array<i64: 2, 32>}, {transform_indices = @transform_2, window_bounds = array<i64: 16, 32>}]} {
    %c0 = arith.constant 0 : index
    %c0_0 = arith.constant 0 : index
    %0 = vector.load %arg1[%c0, %c0_0] : memref<16x32xf32, #tpu.memory_space<vmem>>, vector<16x32xf32>
    %c0_1 = arith.constant 0 : index
    %c0_2 = arith.constant 0 : index
    %1 = vector.load %arg2[%c0_1, %c0_2] : memref<2x32xf32, #tpu.memory_space<vmem>>, vector<2x32xf32>
    %cst = arith.constant dense<0.000000e+00> : vector<16xf32>
    %2 = vector.multi_reduction <add>, %0, %cst [1] : vector<16x32xf32> to vector<16xf32>
    %3 = vector.shape_cast %2 : vector<16xf32> to vector<16x1xf32>
    %cst_3 = arith.constant 3.125000e-02 : f32
    %4 = vector.broadcast %cst_3 : f32 to vector<16x1xf32>
    %5 = arith.mulf %3, %4 : vector<16x1xf32>
    %6 = vector.broadcast %5 : vector<16x1xf32> to vector<16x32xf32>
    %7 = arith.subf %0, %6 : vector<16x32xf32>
    %8 = arith.mulf %7, %7 : vector<16x32xf32>
    %cst_4 = arith.constant dense<0.000000e+00> : vector<16xf32>
    %9 = vector.multi_reduction <add>, %8, %cst_4 [1] : vector<16x32xf32> to vector<16xf32>
    %10 = vector.shape_cast %9 : vector<16xf32> to vector<16x1xf32>
    %cst_5 = arith.constant 3.125000e-02 : f32
    %11 = vector.broadcast %cst_5 : f32 to vector<16x1xf32>
    %12 = arith.mulf %10, %11 : vector<16x1xf32>
    %cst_6 = arith.constant 9.99999974E-6 : f32
    %13 = vector.broadcast %cst_6 : f32 to vector<16x1xf32>
    %14 = arith.addf %12, %13 : vector<16x1xf32>
    %15 = math.rsqrt %14 : vector<16x1xf32>
    %16 = vector.broadcast %15 : vector<16x1xf32> to vector<16x32xf32>
    %17 = arith.mulf %7, %16 : vector<16x32xf32>
    %18 = vector.extract_strided_slice %1 {offsets = [0, 0], sizes = [1, 32], strides = [1, 1]} : vector<2x32xf32> to vector<1x32xf32>
    %19 = vector.broadcast %18 : vector<1x32xf32> to vector<16x32xf32>
    %20 = arith.mulf %17, %19 : vector<16x32xf32>
    %21 = vector.extract_strided_slice %1 {offsets = [1, 0], sizes = [1, 32], strides = [1, 1]} : vector<2x32xf32> to vector<1x32xf32>
    %22 = vector.broadcast %21 : vector<1x32xf32> to vector<16x32xf32>
    %23 = arith.addf %20, %22 : vector<16x32xf32>
    %c0_7 = arith.constant 0 : index
    %c0_8 = arith.constant 0 : index
    %24 = vector.load %arg3[%c0_7, %c0_8] : memref<16x32xf32, #tpu.memory_space<vmem>>, vector<16x32xf32>
    tpu.vector_store %arg3[%c0_7, %c0_8], %23 {strides = array<i32>} : memref<16x32xf32, #tpu.memory_space<vmem>>, vector<16x32xf32>,
    return
  }
  func.func @transform_0(%arg0: i32) -> (i32, i32) {
    %c0_i32 = arith.constant 0 : i32
    %c0_i32_0 = arith.constant 0 : i32
    return %arg0, %c0_i32 : i32, i32
  }
  func.func @transform_1(%arg0: i32) -> (i32, i32) {
    %c0_i32 = arith.constant 0 : i32
    %c0_i32_0 = arith.constant 0 : i32
    %c0_i32_1 = arith.constant 0 : i32
    return %c0_i32, %c0_i32_0 : i32, i32
  }
  func.func @transform_2(%arg0: i32) -> (i32, i32) {
    %c0_i32 = arith.constant 0 : i32
    %c0_i32_0 = arith.constant 0 : i32
    return %arg0, %c0_i32 : i32, i32
  }
}

</mosaic_0001>

<llo_original>
// kernel: tpu_custom_call.1
$region0: #{tpu_custom_call.1}
  #allocation0 [shape = 'u32[]', space=smem, size = 0x4, offset = 0x4, fixed_abs, tag = 'smem constant byte address 0x4 - core index']
  #allocation1 [shape = 'u32[144,128]{1,0:T(1,128)}', space=vmem, size = 0x12000, scoped, tag = 'internal scratch']
  %s0 = inlined_call_operand.hbm [shape: f32[16,32], index: 0, kind: input, shape index: {}]
  %s1 = inlined_call_operand.vmem [shape: f32[2,32], index: 1, kind: input, shape index: {}]
  %s2 = inlined_call_operand.hbm [shape: f32[16,32], index: 2, kind: output, shape index: {}]
  %s3 = sld [smem:[#allocation0]]
  $region22: #{tpu_custom_call.1} parent=0
    _
  %s5 = ssub.s32 1, %s3
  %s6 = scalar_select 0, %s5, %s3
  $region1: #{tpu_custom_call.1} parent=0
    #allocation2 [shape = 'u8[8192]{0}', space=vmem, size = 0x2000, scoped, tag = 'input window, operand 0, single buffered']
    #allocation3 [shape = 's32[1]{0}', space=sflag, size = 0x4, scoped, tag = 'scoped memory for tpu_custom_call.1']
    #allocation4 [shape = 's32[1]{0}', space=sflag, size = 0x4, scoped, tag = 'scoped memory for tpu_custom_call.1']
    #allocation5 [shape = 'u8[8192]{0}', space=vmem, size = 0x2000, scoped, tag = 'output window, operand 0, single buffered']
    %7 = vsyncpa [#allocation3], 0
    %8 = vsyncpa [#allocation4], 0
    // Predicated region
    $region2: #{tpu_custom_call.1} parent=1 // pred_check
      _
    $region3: #{tpu_custom_call.1} parent=1 // pred_check_branch
      %10 = sbr.rel (0) target = $region5
    $region4: #{tpu_custom_call.1} parent=1 // pred_region
      %s12 = ssub.s32 256, 256
      %13 = vsyncadd [#allocation3], %s12
      %s14 = sshll.u32 [#allocation2], 4
      %s15 = int_to_ptr.vmem [resolvable:$true] %s14
      %20 = dma.hbm_to_vmem [thread:$0]  %s0, 256, %s15, [#allocation3], 128, 128, 8
    $region5: #{tpu_custom_call.1} parent=1 // pred_fallthru
      _
    // Predicated region
    $region6: #{tpu_custom_call.1} parent=1 // pred_check
      _
    $region7: #{tpu_custom_call.1} parent=1 // pred_check_branch
      %22 = sbr.rel (0) target = $region9
    $region8: #{tpu_custom_call.1} parent=1 // pred_region
      _
    $region9: #{tpu_custom_call.1} parent=1 // pred_fallthru
      _
    // Predicated region
    $region10: #{tpu_custom_call.1} parent=1 // pred_check
      _
    $region11: #{tpu_custom_call.1} parent=1 // pred_check_branch
      %24 = sbr.rel (0) target = $region13
    $region12: #{tpu_custom_call.1} parent=1 // pred_region
      %25 = dma.done [#allocation3], 256
    $region13: #{tpu_custom_call.1} parent=1 // pred_fallthru
      _
    %v26 = vld [vmem:[#allocation2] sm:$0xff]
    %v27 = vld [vmem:[#allocation2 + $0x8] sm:$0xff]
    %v28 = vld [vmem:[%s1] sm:$0x3]
    %vm29 = vcmask 261120
    %v30 = vsel %vm29, %v26, 0.0
    %31 = vadd.xlane.f32.xlu0 %v30
    %v32 = vpop.xlane.xlu0 %31
    %v33 = vsel %vm29, %v27, 0.0
    %34 = vadd.xlane.f32.xlu0 %v33
    %v35 = vpop.xlane.xlu0 %34
    %v36 = vmul.f32 %v32, 0.03125
    %v37 = vmul.f32 %v35, 0.03125
    %v38 = vsub.f32 %v26, %v36
    %v39 = vsub.f32 %v27, %v37
    %v40 = vmul.f32 %v38, %v38
    %v41 = vmul.f32 %v39, %v39
    %v42 = vsel %vm29, %v40, 0.0
    %43 = vadd.xlane.f32.xlu0 %v42
    %v44 = vpop.xlane.xlu0 %43
    %v45 = vsel %vm29, %v41, 0.0
    %46 = vadd.xlane.f32.xlu0 %v45
    %v47 = vpop.xlane.xlu0 %46
    %v48 = vmul.f32 %v44, 0.03125
    %v49 = vmul.f32 %v47, 0.03125
    %v50 = vadd.f32 %v48, 1e-05
    %v51 = vadd.f32 %v49, 1e-05
    %v52 = vrsqrt.pop %v50
    %v53 = vrsqrt.pop %v51
    %v54 = vmul.f32 %v38, %v52
    %v55 = vmul.f32 %v39, %v53
    %v56 = vlaneseq
    %v57 = vshrl.u32 %v56, 7
    %v58 = vsub.s32 0, %v57
    %v59 = vrot.slane %v28, %v58
    %v60 = vmul.f32 %v54, %v59
    %v61 = vmul.f32 %v55, %v59
    %v62 = vlaneseq
    %v63 = vshrl.u32 %v62, 7
    %v64 = vsub.s32 1, %v63
    %v65 = vrot.slane %v28, %v64
    %v66 = vadd.f32 %v60, %v65
    %v67 = vadd.f32 %v61, %v65
    %68 = vst.msk [vmem:[#allocation5] sm:$0xff] %vm29, %v66
    %69 = vst.msk [vmem:[#allocation5 + $0x8] sm:$0xff] %vm29, %v67
    // Predicated region
    $region14: #{tpu_custom_call.1} parent=1 // pred_check
      _
    $region15: #{tpu_custom_call.1} parent=1 // pred_check_branch
      %71 = sbr.rel (0) target = $region17
    $region16: #{tpu_custom_call.1} parent=1 // pred_region
      %s73 = ssub.s32 256, 256
      %74 = vsyncadd [#allocation4], %s73
      %s75 = sshll.u32 [#allocation5], 4
      %s76 = int_to_ptr.vmem [resolvable:$true] %s75
      %81 = dma.vmem_to_hbm [thread:$0]  %s76, 256, %s2, [#allocation4], 128, 128, 8
    $region17: #{tpu_custom_call.1} parent=1 // pred_fallthru
      _
    // Predicated region
    $region18: #{tpu_custom_call.1} parent=1 // pred_check
      _
    $region19: #{tpu_custom_call.1} parent=1 // pred_check_branch
      %83 = sbr.rel (0) target = $region21
    $region20: #{tpu_custom_call.1} parent=1 // pred_region
      %84 = dma.done [#allocation4], 256
    $region21: #{tpu_custom_call.1} parent=1 // pred_fallthru
      _
    %85 = vsyncpa [#allocation3], 1
    %86 = vsyncpa [#allocation4], 1

</llo_original>
